<compile_context>
chip_gen: v6e
topology: v6e:2x2x1
jax: 0.10.0
libtpu: 0.0.40
codegen_flags: <defaults>
</compile_context>

<pallas_src>
import jax
import jax.numpy as jnp
from jax.experimental import pallas as pl
from jax.experimental.pallas import tpu as pltpu


def neumf_kernel(u_mlp_ref, u_mf_ref,
                 pi_mlp_ref, pi_mf_ref, ni_mlp_ref, ni_mf_ref,
                 w0u_ref, w0i_ref, b0_ref,
                 w1_ref, b1_ref,
                 w2_ref, b2_ref,
                 wo_mlp_ref, wo_mf_ref, bout_ref,
                 out_ref):
    f32 = jnp.float32

    # Shared user contribution to mlp_lin0 (computed once for pos & neg towers).
    hu = jnp.dot(u_mlp_ref[...], w0u_ref[...],
                 preferred_element_type=f32) + b0_ref[...]           # [TB, E] f32
    u_mf = u_mf_ref[...].astype(f32)                                  # [TB, E] f32
    wo_mlp = wo_mlp_ref[...]                                          # [1, E] f32
    wo_mf = wo_mf_ref[...]                                            # [1, E] f32

    def tower(i_mlp_ref, i_mf_ref):
        # mlp_lin0 on concat([u, i]) == u @ W0[:E] + i @ W0[E:]
        h = hu + jnp.dot(i_mlp_ref[...], w0i_ref[...],
                         preferred_element_type=f32)
        h = jnp.maximum(h, 0.0).astype(jnp.bfloat16)
        # mlp_lin1 + ReLU
        h = jnp.dot(h, w1_ref[...], preferred_element_type=f32) + b1_ref[...]
        h = jnp.maximum(h, 0.0).astype(jnp.bfloat16)
        # mlp_lin2 + ReLU (kept in f32 for the VPU projection)
        h = jnp.dot(h, w2_ref[...], preferred_element_type=f32) + b2_ref[...]
        h = jnp.maximum(h, 0.0)                                       # [TB, E] f32
        # GMF branch (f32 elementwise)
        mf = u_mf * i_mf_ref[...].astype(f32)                         # [TB, E] f32
        # out_lin (N=1): VPU multiply + lane reduction instead of an MXU matmul.
        return jnp.sum(h * wo_mlp + mf * wo_mf, axis=-1,
                       keepdims=True) + bout_ref[...]                 # [TB, 1] f32

    out_ref[:, 0:1] = tower(pi_mlp_ref, pi_mf_ref)
    out_ref[:, 1:2] = tower(ni_mlp_ref, ni_mf_ref)


def _round_up(x, m):
    return (x + m - 1) // m * m


def neumf_pair_logits(u_mlp, u_mf, pos_mlp, pos_mf, neg_mlp, neg_mf, params,
                      tile_b=1024):
    """Fused pos+neg NeuMF towers. Returns (pos_logits[B], neg_logits[B])."""
    B, E = u_mlp.shape
    tile_b = min(tile_b, _round_up(B, 8))
    B_pad = _round_up(B, tile_b)

    def pad(x):
        return x if B_pad == B else jnp.pad(x, ((0, B_pad - B), (0, 0)))

    acts = [pad(a) for a in (u_mlp, u_mf, pos_mlp, pos_mf, neg_mlp, neg_mf)]

    act_spec = pl.BlockSpec((tile_b, E), lambda i: (i, 0))

    def const_spec(shape):
        return pl.BlockSpec(shape, lambda i: (0, 0))

    in_specs = [act_spec] * 6 + [
        const_spec((E, E)), const_spec((E, E)), const_spec((1, E)),   # w0u, w0i, b0
        const_spec((E, E)), const_spec((1, E)),                       # w1, b1
        const_spec((E, E)), const_spec((1, E)),                       # w2, b2
        const_spec((1, E)), const_spec((1, E)), const_spec((1, 1)),   # wout rows, bout
    ]

    flops = 14 * E * E * B_pad + 12 * E * B_pad          # 7 matmul halves + elementwise
    bytes_accessed = (6 * B_pad * E * 2                  # bf16 activation reads
                      + B_pad * 2 * 4                    # f32 logits out
                      + 4 * E * E * 2                    # bf16 MLP weights
                      + (5 * E + 1) * 4)                 # f32 biases + out weights

    out = pl.pallas_call(
        neumf_kernel,
        out_shape=jax.ShapeDtypeStruct((B_pad, 2), jnp.float32),
        grid=(B_pad // tile_b,),
        in_specs=in_specs,
        out_specs=pl.BlockSpec((tile_b, 2), lambda i: (i, 0)),
        compiler_params=pltpu.CompilerParams(
            dimension_semantics=("parallel",),
            vmem_limit_bytes=32 * 1024 * 1024),
        cost_estimate=pl.CostEstimate(flops=int(flops), transcendentals=0,
                                      bytes_accessed=int(bytes_accessed)),
    )(*acts,
      params["w0u"], params["w0i"], params["b0"],
      params["w1"], params["b1"],
      params["w2"], params["b2"],
      params["wout_mlp"], params["wout_mf"], params["bout"])

    return out[:B, 0], out[:B, 1]


def init_params(key, user_num, item_num, edim):
    ks = jax.random.split(key, 8)
    bf16 = jnp.bfloat16

    def emb(k, n, scale):
        return jax.random.uniform(k, (n, edim), jnp.float32,
                                  -scale, scale).astype(bf16)

    p = {}
    # Embedding tables (uniform init matching the PyTorch nn.init.uniform_ calls).
    p["emb_user_mlp"] = emb(ks[0], user_num, 0.5 / user_num)
    p["emb_item_mlp"] = emb(ks[1], item_num, 0.5 / item_num)
    p["emb_user_mf"] = emb(ks[2], user_num, 0.5 / user_num)
    p["emb_item_mf"] = emb(ks[3], item_num, 0.5 / item_num)

    # Linear layers, stored as [in, out] (transposed vs PyTorch [out, in]).
    def lin(k, fan_in, fan_out):
        bound = 1.0 / (fan_in ** 0.5)
        kw, kb = jax.random.split(k)
        w = jax.random.uniform(kw, (fan_in, fan_out), jnp.float32, -bound, bound)
        b = jax.random.uniform(kb, (1, fan_out), jnp.float32, -bound, bound)
        return w, b

    w0, b0 = lin(ks[4], 2 * edim, edim)     # mlp_lin0
    w1, b1 = lin(ks[5], edim, edim)         # mlp_lin1
    w2, b2 = lin(ks[6], edim, edim)         # mlp_lin2
    wout, bout = lin(ks[7], 2 * edim, 1)    # out_lin

    p["w0u"], p["w0i"] = w0[:edim].astype(bf16), w0[edim:].astype(bf16)
    p["b0"] = b0
    p["w1"], p["b1"] = w1.astype(bf16), b1
    p["w2"], p["b2"] = w2.astype(bf16), b2
    # out_lin weights stay f32 rows for the VPU reduce path.
    p["wout_mlp"] = wout[:edim, 0].reshape(1, edim)
    p["wout_mf"] = wout[edim:, 0].reshape(1, edim)
    p["bout"] = bout                        # (1, 1)
    return p


def neumf_forward(params, uid, pos, neg):
    # Embedding gathers (plain JAX glue, bf16 tables -> bf16 [B, E] activations).
    u_mlp = params["emb_user_mlp"][uid]
    u_mf = params["emb_user_mf"][uid]
    pos_i_mlp = params["emb_item_mlp"][pos]
    pos_i_mf = params["emb_item_mf"][pos]
    neg_i_mlp = params["emb_item_mlp"][neg]
    neg_i_mf = params["emb_item_mf"][neg]
    # One fused kernel call for both towers.
    return neumf_pair_logits(u_mlp, u_mf, pos_i_mlp, pos_i_mf,
                             neg_i_mlp, neg_i_mf, params)


def neumf_forward_ref(params, uid, pos, neg):
    """Pure-JAX reference with matching bf16-operand / f32-accumulate semantics."""
    f32 = jnp.float32
    u_mlp = params["emb_user_mlp"][uid]
    u_mf = params["emb_user_mf"][uid].astype(f32)

    def tower(i_mlp, i_mf):
        h = (jnp.dot(u_mlp, params["w0u"], preferred_element_type=f32)
             + jnp.dot(i_mlp, params["w0i"], preferred_element_type=f32)
             + params["b0"])
        h = jnp.maximum(h, 0.0).astype(jnp.bfloat16)
        h = jnp.maximum(jnp.dot(h, params["w1"], preferred_element_type=f32)
                        + params["b1"], 0.0).astype(jnp.bfloat16)
        h = jnp.maximum(jnp.dot(h, params["w2"], preferred_element_type=f32)
                        + params["b2"], 0.0)
        mf = u_mf * i_mf.astype(f32)
        return (jnp.sum(h * params["wout_mlp"] + mf * params["wout_mf"],
                        axis=-1, keepdims=True) + params["bout"])[:, 0]

    return (tower(params["emb_item_mlp"][pos], params["emb_item_mf"][pos]),
            tower(params["emb_item_mlp"][neg], params["emb_item_mf"][neg]))


if __name__ == "__main__":
    user_num, item_num, edim, batch = 64, 128, 32, 8
    key = jax.random.PRNGKey(0)
    kp, ku, kpos, kneg = jax.random.split(key, 4)

    params = init_params(kp, user_num, item_num, edim)
    uid = jax.random.randint(ku, (batch,), 0, user_num)
    pos = jax.random.randint(kpos, (batch,), 0, item_num)
    neg = jax.random.randint(kneg, (batch,), 0, item_num)

    fwd = jax.jit(neumf_forward)
    pos_logits, neg_logits = fwd(params, uid, pos, neg)
    jax.block_until_ready((pos_logits, neg_logits))

    ref_pos, ref_neg = neumf_forward_ref(params, uid, pos, neg)
    assert pos_logits.shape == (batch,) and neg_logits.shape == (batch,)
    assert jnp.allclose(pos_logits, ref_pos, atol=2e-3, rtol=2e-3)
    assert jnp.allclose(neg_logits, ref_neg, atol=2e-3, rtol=2e-3)
    print("KERNEL_OK")
</pallas_src>

<mosaic_0001>
module attributes {stable_mosaic.version = 11 : i64} {
  func.func @neumf_kernel(%arg0: i32, %arg1: memref<8x32xbf16, #tpu.memory_space<vmem>>, %arg2: memref<8x32xbf16, #tpu.memory_space<vmem>>, %arg3: memref<8x32xbf16, #tpu.memory_space<vmem>>, %arg4: memref<8x32xbf16, #tpu.memory_space<vmem>>, %arg5: memref<8x32xbf16, #tpu.memory_space<vmem>>, %arg6: memref<8x32xbf16, #tpu.memory_space<vmem>>, %arg7: memref<32x32xbf16, #tpu.memory_space<vmem>>, %arg8: memref<32x32xbf16, #tpu.memory_space<vmem>>, %arg9: memref<1x32xf32, #tpu.memory_space<vmem>>, %arg10: memref<32x32xbf16, #tpu.memory_space<vmem>>, %arg11: memref<1x32xf32, #tpu.memory_space<vmem>>, %arg12: memref<32x32xbf16, #tpu.memory_space<vmem>>, %arg13: memref<1x32xf32, #tpu.memory_space<vmem>>, %arg14: memref<1x32xf32, #tpu.memory_space<vmem>>, %arg15: memref<1x32xf32, #tpu.memory_space<vmem>>, %arg16: memref<1x1xf32, #tpu.memory_space<vmem>>, %arg17: memref<8x2xf32, #tpu.memory_space<vmem>>) attributes {dimension_semantics = [#tpu.dimension_semantics<parallel>], iteration_bounds = array<i64: 1>, scalar_prefetch = 0 : i64, scratch_operands = 0 : i64, tpu.core_type = #tpu.core_type<tc>, window_params = [{transform_indices = @transform_0, window_bounds = array<i64: 8, 32>}, {transform_indices = @transform_1, window_bounds = array<i64: 8, 32>}, {transform_indices = @transform_2, window_bounds = array<i64: 8, 32>}, {transform_indices = @transform_3, window_bounds = array<i64: 8, 32>}, {transform_indices = @transform_4, window_bounds = array<i64: 8, 32>}, {transform_indices = @transform_5, window_bounds = array<i64: 8, 32>}, {pipeline_mode = #tpu.pipeline_mode<synchronous>, transform_indices = @transform_6, window_bounds = array<i64: 32, 32>}, {pipeline_mode = #tpu.pipeline_mode<synchronous>, transform_indices = @transform_7, window_bounds = array<i64: 32, 32>}, {pipeline_mode = #tpu.pipeline_mode<synchronous>, transform_indices = @transform_8, window_bounds = array<i64: 1, 32>}, {pipeline_mode = #tpu.pipeline_mode<synchronous>, transform_indices = @transform_9, window_bounds = array<i64: 32, 32>}, {pipeline_mode = #tpu.pipeline_mode<synchronous>, transform_indices = @transform_10, window_bounds = array<i64: 1, 32>}, {pipeline_mode = #tpu.pipeline_mode<synchronous>, transform_indices = @transform_11, window_bounds = array<i64: 32, 32>}, {pipeline_mode = #tpu.pipeline_mode<synchronous>, transform_indices = @transform_12, window_bounds = array<i64: 1, 32>}, {pipeline_mode = #tpu.pipeline_mode<synchronous>, transform_indices = @transform_13, window_bounds = array<i64: 1, 32>}, {pipeline_mode = #tpu.pipeline_mode<synchronous>, transform_indices = @transform_14, window_bounds = array<i64: 1, 32>}, {pipeline_mode = #tpu.pipeline_mode<synchronous>, transform_indices = @transform_15, window_bounds = array<i64: 1, 1>}, {transform_indices = @transform_16, window_bounds = array<i64: 8, 2>}]} {
    %c0 = arith.constant 0 : index
    %c0_0 = arith.constant 0 : index
    %0 = vector.load %arg1[%c0, %c0_0] : memref<8x32xbf16, #tpu.memory_space<vmem>>, vector<8x32xbf16>
    %c0_1 = arith.constant 0 : index
    %c0_2 = arith.constant 0 : index
    %1 = vector.load %arg7[%c0_1, %c0_2] : memref<32x32xbf16, #tpu.memory_space<vmem>>, vector<32x32xbf16>
    %cst = arith.constant dense<0.000000e+00> : vector<8x32xf32>
    %2 = tpu.matmul %0, %1, %cst {dimension_numbers = #tpu.dot_dimension_numbers<[1], [0], [0], [1], [0, 0, 1, 1], [], []>} : vector<8x32xbf16>, vector<32x32xbf16>, vector<8x32xf32> -> vector<8x32xf32>
    %c0_3 = arith.constant 0 : index
    %c0_4 = arith.constant 0 : index
    %3 = vector.load %arg9[%c0_3, %c0_4] : memref<1x32xf32, #tpu.memory_space<vmem>>, vector<1x32xf32>
    %4 = vector.broadcast %3 : vector<1x32xf32> to vector<8x32xf32>
    %5 = arith.addf %2, %4 : vector<8x32xf32>
    %c0_5 = arith.constant 0 : index
    %c0_6 = arith.constant 0 : index
    %6 = vector.load %arg2[%c0_5, %c0_6] : memref<8x32xbf16, #tpu.memory_space<vmem>>, vector<8x32xbf16>
    %7 = arith.extf %6 : vector<8x32xbf16> to vector<8x32xf32>
    %c0_7 = arith.constant 0 : index
    %c0_8 = arith.constant 0 : index
    %8 = vector.load %arg14[%c0_7, %c0_8] : memref<1x32xf32, #tpu.memory_space<vmem>>, vector<1x32xf32>
    %c0_9 = arith.constant 0 : index
    %c0_10 = arith.constant 0 : index
    %9 = vector.load %arg15[%c0_9, %c0_10] : memref<1x32xf32, #tpu.memory_space<vmem>>, vector<1x32xf32>
    %c0_11 = arith.constant 0 : index
    %c0_12 = arith.constant 0 : index
    %10 = vector.load %arg3[%c0_11, %c0_12] : memref<8x32xbf16, #tpu.memory_space<vmem>>, vector<8x32xbf16>
    %c0_13 = arith.constant 0 : index
    %c0_14 = arith.constant 0 : index
    %11 = vector.load %arg8[%c0_13, %c0_14] : memref<32x32xbf16, #tpu.memory_space<vmem>>, vector<32x32xbf16>
    %cst_15 = arith.constant dense<0.000000e+00> : vector<8x32xf32>
    %12 = tpu.matmul %10, %11, %cst_15 {dimension_numbers = #tpu.dot_dimension_numbers<[1], [0], [0], [1], [0, 0, 1, 1], [], []>} : vector<8x32xbf16>, vector<32x32xbf16>, vector<8x32xf32> -> vector<8x32xf32>
    %13 = arith.addf %5, %12 : vector<8x32xf32>
    %cst_16 = arith.constant 0.000000e+00 : f32
    %14 = vector.broadcast %cst_16 : f32 to vector<8x32xf32>
    %15 = arith.maximumf %13, %14 : vector<8x32xf32>
    %16 = arith.truncf %15 : vector<8x32xf32> to vector<8x32xbf16>
    %c0_17 = arith.constant 0 : index
    %c0_18 = arith.constant 0 : index
    %17 = vector.load %arg10[%c0_17, %c0_18] : memref<32x32xbf16, #tpu.memory_space<vmem>>, vector<32x32xbf16>
    %cst_19 = arith.constant dense<0.000000e+00> : vector<8x32xf32>
    %18 = tpu.matmul %16, %17, %cst_19 {dimension_numbers = #tpu.dot_dimension_numbers<[1], [0], [0], [1], [0, 0, 1, 1], [], []>} : vector<8x32xbf16>, vector<32x32xbf16>, vector<8x32xf32> -> vector<8x32xf32>
    %c0_20 = arith.constant 0 : index
    %c0_21 = arith.constant 0 : index
    %19 = vector.load %arg11[%c0_20, %c0_21] : memref<1x32xf32, #tpu.memory_space<vmem>>, vector<1x32xf32>
    %20 = vector.broadcast %19 : vector<1x32xf32> to vector<8x32xf32>
    %21 = arith.addf %18, %20 : vector<8x32xf32>
    %cst_22 = arith.constant 0.000000e+00 : f32
    %22 = vector.broadcast %cst_22 : f32 to vector<8x32xf32>
    %23 = arith.maximumf %21, %22 : vector<8x32xf32>
    %24 = arith.truncf %23 : vector<8x32xf32> to vector<8x32xbf16>
    %c0_23 = arith.constant 0 : index
    %c0_24 = arith.constant 0 : index
    %25 = vector.load %arg12[%c0_23, %c0_24] : memref<32x32xbf16, #tpu.memory_space<vmem>>, vector<32x32xbf16>
    %cst_25 = arith.constant dense<0.000000e+00> : vector<8x32xf32>
    %26 = tpu.matmul %24, %25, %cst_25 {dimension_numbers = #tpu.dot_dimension_numbers<[1], [0], [0], [1], [0, 0, 1, 1], [], []>} : vector<8x32xbf16>, vector<32x32xbf16>, vector<8x32xf32> -> vector<8x32xf32>
    %c0_26 = arith.constant 0 : index
    %c0_27 = arith.constant 0 : index
    %27 = vector.load %arg13[%c0_26, %c0_27] : memref<1x32xf32, #tpu.memory_space<vmem>>, vector<1x32xf32>
    %28 = vector.broadcast %27 : vector<1x32xf32> to vector<8x32xf32>
    %29 = arith.addf %26, %28 : vector<8x32xf32>
    %cst_28 = arith.constant 0.000000e+00 : f32
    %30 = vector.broadcast %cst_28 : f32 to vector<8x32xf32>
    %31 = arith.maximumf %29, %30 : vector<8x32xf32>
    %c0_29 = arith.constant 0 : index
    %c0_30 = arith.constant 0 : index
    %32 = vector.load %arg4[%c0_29, %c0_30] : memref<8x32xbf16, #tpu.memory_space<vmem>>, vector<8x32xbf16>
    %33 = arith.extf %32 : vector<8x32xbf16> to vector<8x32xf32>
    %34 = arith.mulf %7, %33 : vector<8x32xf32>
    %35 = vector.broadcast %8 : vector<1x32xf32> to vector<8x32xf32>
    %36 = arith.mulf %31, %35 : vector<8x32xf32>
    %37 = vector.broadcast %9 : vector<1x32xf32> to vector<8x32xf32>
    %38 = arith.mulf %34, %37 : vector<8x32xf32>
    %39 = arith.addf %36, %38 : vector<8x32xf32>
    %cst_31 = arith.constant dense<0.000000e+00> : vector<8xf32>
    %40 = vector.multi_reduction <add>, %39, %cst_31 [1] : vector<8x32xf32> to vector<8xf32>
    %41 = vector.shape_cast %40 : vector<8xf32> to vector<8x1xf32>
    %c0_32 = arith.constant 0 : index
    %c0_33 = arith.constant 0 : index
    %42 = vector.load %arg16[%c0_32, %c0_33] : memref<1x1xf32, #tpu.memory_space<vmem>>, vector<1x1xf32>
    %43 = vector.broadcast %42 : vector<1x1xf32> to vector<8x1xf32>
    %44 = arith.addf %41, %43 : vector<8x1xf32>
    %c0_34 = arith.constant 0 : index
    %c0_35 = arith.constant 0 : index
    %45 = vector.load %arg17[%c0_34, %c0_35] : memref<8x2xf32, #tpu.memory_space<vmem>>, vector<8x1xf32>
    tpu.vector_store %arg17[%c0_34, %c0_35], %44 {strides = array<i32>} : memref<8x2xf32, #tpu.memory_space<vmem>>, vector<8x1xf32>,
    %c0_36 = arith.constant 0 : index
    %c0_37 = arith.constant 0 : index
    %46 = vector.load %arg5[%c0_36, %c0_37] : memref<8x32xbf16, #tpu.memory_space<vmem>>, vector<8x32xbf16>
    %c0_38 = arith.constant 0 : index
    %c0_39 = arith.constant 0 : index
    %47 = vector.load %arg8[%c0_38, %c0_39] : memref<32x32xbf16, #tpu.memory_space<vmem>>, vector<32x32xbf16>
    %cst_40 = arith.constant dense<0.000000e+00> : vector<8x32xf32>
    %48 = tpu.matmul %46, %47, %cst_40 {dimension_numbers = #tpu.dot_dimension_numbers<[1], [0], [0], [1], [0, 0, 1, 1], [], []>} : vector<8x32xbf16>, vector<32x32xbf16>, vector<8x32xf32> -> vector<8x32xf32>
    %49 = arith.addf %5, %48 : vector<8x32xf32>
    %cst_41 = arith.constant 0.000000e+00 : f32
    %50 = vector.broadcast %cst_41 : f32 to vector<8x32xf32>
    %51 = arith.maximumf %49, %50 : vector<8x32xf32>
    %52 = arith.truncf %51 : vector<8x32xf32> to vector<8x32xbf16>
    %c0_42 = arith.constant 0 : index
    %c0_43 = arith.constant 0 : index
    %53 = vector.load %arg10[%c0_42, %c0_43] : memref<32x32xbf16, #tpu.memory_space<vmem>>, vector<32x32xbf16>
    %cst_44 = arith.constant dense<0.000000e+00> : vector<8x32xf32>
    %54 = tpu.matmul %52, %53, %cst_44 {dimension_numbers = #tpu.dot_dimension_numbers<[1], [0], [0], [1], [0, 0, 1, 1], [], []>} : vector<8x32xbf16>, vector<32x32xbf16>, vector<8x32xf32> -> vector<8x32xf32>
    %c0_45 = arith.constant 0 : index
    %c0_46 = arith.constant 0 : index
    %55 = vector.load %arg11[%c0_45, %c0_46] : memref<1x32xf32, #tpu.memory_space<vmem>>, vector<1x32xf32>
    %56 = vector.broadcast %55 : vector<1x32xf32> to vector<8x32xf32>
    %57 = arith.addf %54, %56 : vector<8x32xf32>
    %cst_47 = arith.constant 0.000000e+00 : f32
    %58 = vector.broadcast %cst_47 : f32 to vector<8x32xf32>
    %59 = arith.maximumf %57, %58 : vector<8x32xf32>
    %60 = arith.truncf %59 : vector<8x32xf32> to vector<8x32xbf16>
    %c0_48 = arith.constant 0 : index
    %c0_49 = arith.constant 0 : index
    %61 = vector.load %arg12[%c0_48, %c0_49] : memref<32x32xbf16, #tpu.memory_space<vmem>>, vector<32x32xbf16>
    %cst_50 = arith.constant dense<0.000000e+00> : vector<8x32xf32>
    %62 = tpu.matmul %60, %61, %cst_50 {dimension_numbers = #tpu.dot_dimension_numbers<[1], [0], [0], [1], [0, 0, 1, 1], [], []>} : vector<8x32xbf16>, vector<32x32xbf16>, vector<8x32xf32> -> vector<8x32xf32>
    %c0_51 = arith.constant 0 : index
    %c0_52 = arith.constant 0 : index
    %63 = vector.load %arg13[%c0_51, %c0_52] : memref<1x32xf32, #tpu.memory_space<vmem>>, vector<1x32xf32>
    %64 = vector.broadcast %63 : vector<1x32xf32> to vector<8x32xf32>
    %65 = arith.addf %62, %64 : vector<8x32xf32>
    %cst_53 = arith.constant 0.000000e+00 : f32
    %66 = vector.broadcast %cst_53 : f32 to vector<8x32xf32>
    %67 = arith.maximumf %65, %66 : vector<8x32xf32>
    %c0_54 = arith.constant 0 : index
    %c0_55 = arith.constant 0 : index
    %68 = vector.load %arg6[%c0_54, %c0_55] : memref<8x32xbf16, #tpu.memory_space<vmem>>, vector<8x32xbf16>
    %69 = arith.extf %68 : vector<8x32xbf16> to vector<8x32xf32>
    %70 = arith.mulf %7, %69 : vector<8x32xf32>
    %71 = vector.broadcast %8 : vector<1x32xf32> to vector<8x32xf32>
    %72 = arith.mulf %67, %71 : vector<8x32xf32>
    %73 = vector.broadcast %9 : vector<1x32xf32> to vector<8x32xf32>
    %74 = arith.mulf %70, %73 : vector<8x32xf32>
    %75 = arith.addf %72, %74 : vector<8x32xf32>
    %cst_56 = arith.constant dense<0.000000e+00> : vector<8xf32>
    %76 = vector.multi_reduction <add>, %75, %cst_56 [1] : vector<8x32xf32> to vector<8xf32>
    %77 = vector.shape_cast %76 : vector<8xf32> to vector<8x1xf32>
    %c0_57 = arith.constant 0 : index
    %c0_58 = arith.constant 0 : index
    %78 = vector.load %arg16[%c0_57, %c0_58] : memref<1x1xf32, #tpu.memory_space<vmem>>, vector<1x1xf32>
    %79 = vector.broadcast %78 : vector<1x1xf32> to vector<8x1xf32>
    %80 = arith.addf %77, %79 : vector<8x1xf32>
    %c0_59 = arith.constant 0 : index
    %c1 = arith.constant 1 : index
    %81 = vector.load %arg17[%c0_59, %c1] : memref<8x2xf32, #tpu.memory_space<vmem>>, vector<8x1xf32>
    tpu.vector_store %arg17[%c0_59, %c1], %80 {strides = array<i32>} : memref<8x2xf32, #tpu.memory_space<vmem>>, vector<8x1xf32>,
    return
  }
  func.func @transform_0(%arg0: i32) -> (i32, i32) {
    %c0_i32 = arith.constant 0 : i32
    %c0_i32_0 = arith.constant 0 : i32
    return %arg0, %c0_i32 : i32, i32
  }
  func.func @transform_1(%arg0: i32) -> (i32, i32) {
    %c0_i32 = arith.constant 0 : i32
    %c0_i32_0 = arith.constant 0 : i32
    return %arg0, %c0_i32 : i32, i32
  }
  func.func @transform_2(%arg0: i32) -> (i32, i32) {
    %c0_i32 = arith.constant 0 : i32
    %c0_i32_0 = arith.constant 0 : i32
    return %arg0, %c0_i32 : i32, i32
  }
  func.func @transform_3(%arg0: i32) -> (i32, i32) {
    %c0_i32 = arith.constant 0 : i32
    %c0_i32_0 = arith.constant 0 : i32
    return %arg0, %c0_i32 : i32, i32
  }
  func.func @transform_4(%arg0: i32) -> (i32, i32) {
    %c0_i32 = arith.constant 0 : i32
    %c0_i32_0 = arith.constant 0 : i32
    return %arg0, %c0_i32 : i32, i32
  }
  func.func @transform_5(%arg0: i32) -> (i32, i32) {
    %c0_i32 = arith.constant 0 : i32
    %c0_i32_0 = arith.constant 0 : i32
    return %arg0, %c0_i32 : i32, i32
  }
  func.func @transform_6(%arg0: i32) -> (i32, i32) {
    %c0_i32 = arith.constant 0 : i32
    %c0_i32_0 = arith.constant 0 : i32
    %c0_i32_1 = arith.constant 0 : i32
    return %c0_i32, %c0_i32_0 : i32, i32
  }
  func.func @transform_7(%arg0: i32) -> (i32, i32) {
    %c0_i32 = arith.constant 0 : i32
    %c0_i32_0 = arith.constant 0 : i32
    %c0_i32_1 = arith.constant 0 : i32
    return %c0_i32, %c0_i32_0 : i32, i32
  }
  func.func @transform_8(%arg0: i32) -> (i32, i32) {
    %c0_i32 = arith.constant 0 : i32
    %c0_i32_0 = arith.constant 0 : i32
    %c0_i32_1 = arith.constant 0 : i32
    return %c0_i32, %c0_i32_0 : i32, i32
  }
  func.func @transform_9(%arg0: i32) -> (i32, i32) {
    %c0_i32 = arith.constant 0 : i32
    %c0_i32_0 = arith.constant 0 : i32
    %c0_i32_1 = arith.constant 0 : i32
    return %c0_i32, %c0_i32_0 : i32, i32
  }
  func.func @transform_10(%arg0: i32) -> (i32, i32) {
    %c0_i32 = arith.constant 0 : i32
    %c0_i32_0 = arith.constant 0 : i32
    %c0_i32_1 = arith.constant 0 : i32
    return %c0_i32, %c0_i32_0 : i32, i32
  }
  func.func @transform_11(%arg0: i32) -> (i32, i32) {
    %c0_i32 = arith.constant 0 : i32
    %c0_i32_0 = arith.constant 0 : i32
    %c0_i32_1 = arith.constant 0 : i32
    return %c0_i32, %c0_i32_0 : i32, i32
  }
  func.func @transform_12(%arg0: i32) -> (i32, i32) {
    %c0_i32 = arith.constant 0 : i32
    %c0_i32_0 = arith.constant 0 : i32
    %c0_i32_1 = arith.constant 0 : i32
    return %c0_i32, %c0_i32_0 : i32, i32
  }
  func.func @transform_13(%arg0: i32) -> (i32, i32) {
    %c0_i32 = arith.constant 0 : i32
    %c0_i32_0 = arith.constant 0 : i32
    %c0_i32_1 = arith.constant 0 : i32
    return %c0_i32, %c0_i32_0 : i32, i32
  }
  func.func @transform_14(%arg0: i32) -> (i32, i32) {
    %c0_i32 = arith.constant 0 : i32
    %c0_i32_0 = arith.constant 0 : i32
    %c0_i32_1 = arith.constant 0 : i32
    return %c0_i32, %c0_i32_0 : i32, i32
  }
  func.func @transform_15(%arg0: i32) -> (i32, i32) {
    %c0_i32 = arith.constant 0 : i32
    %c0_i32_0 = arith.constant 0 : i32
    %c0_i32_1 = arith.constant 0 : i32
    return %c0_i32, %c0_i32_0 : i32, i32
  }
  func.func @transform_16(%arg0: i32) -> (i32, i32) {
    %c0_i32 = arith.constant 0 : i32
    %c0_i32_0 = arith.constant 0 : i32
    return %arg0, %c0_i32 : i32, i32
  }
}

</mosaic_0001>

<llo_original>
// kernel: neumf_forward.1
$region0: #{neumf_forward.1}
  #allocation0 [shape = 'u32[]', space=smem, size = 0x4, offset = 0x4, fixed_abs, tag = 'smem constant byte address 0x4 - core index']
  #allocation1 [shape = 'u32[144,128]{1,0:T(1,128)}', space=vmem, size = 0x12000, scoped, tag = 'internal scratch']
  #allocation2 [shape = 'f32[1,1]{1,0:T(1,128)S(1)}', space=vmem, size = 0x200, scoped, tag = 'scoped memory for neumf_forward.1']
  %s0 = inlined_call_operand.vmem [shape: bf16[8,32], index: 0, kind: input, shape index: {}]
  %s1 = inlined_call_operand.vmem [shape: bf16[8,32], index: 1, kind: input, shape index: {}]
  %s2 = inlined_call_operand.vmem [shape: bf16[8,32], index: 2, kind: input, shape index: {}]
  %s3 = inlined_call_operand.vmem [shape: bf16[8,32], index: 3, kind: input, shape index: {}]
  %s4 = inlined_call_operand.vmem [shape: bf16[8,32], index: 4, kind: input, shape index: {}]
  %s5 = inlined_call_operand.vmem [shape: bf16[8,32], index: 5, kind: input, shape index: {}]
  %s6 = inlined_call_operand.vmem [shape: bf16[32,32], index: 6, kind: input, shape index: {}]
  %s7 = inlined_call_operand.vmem [shape: bf16[32,32], index: 7, kind: input, shape index: {}]
  %s8 = inlined_call_operand.vmem [shape: f32[1,32], index: 8, kind: input, shape index: {}]
  %s9 = inlined_call_operand.vmem [shape: bf16[32,32], index: 9, kind: input, shape index: {}]
  %s10 = inlined_call_operand.vmem [shape: f32[1,32], index: 10, kind: input, shape index: {}]
  %s11 = inlined_call_operand.vmem [shape: bf16[32,32], index: 11, kind: input, shape index: {}]
  %s12 = inlined_call_operand.vmem [shape: f32[1,32], index: 12, kind: input, shape index: {}]
  %s13 = inlined_call_operand.vmem [shape: f32[1,32], index: 13, kind: input, shape index: {}]
  %s14 = inlined_call_operand.vmem [shape: f32[1,32], index: 14, kind: input, shape index: {}]
  %s15 = inlined_call_operand.<no memory space> [shape: f32[1,1], index: 15, kind: input, shape index: {}]
  %s16 = inlined_call_operand.vmem [shape: f32[8,2], index: 16, kind: output, shape index: {}]
  %s17 = sld [smem:[#allocation0]]
  $region74: #{neumf_forward.1} parent=0
    _
  %s19 = ssub.s32 1, %s17
  %s20 = scalar_select 0, %s19, %s17
  %v21 = vstv %s15
  %22 = vst [vmem:[#allocation2] sm:$0x1] %v21
  // Predicated region
  $region2: #{neumf_forward.1} parent=0 // pred_check
    _
  $region3: #{neumf_forward.1} parent=0 // pred_check_branch
    %24 = sbr.rel (0) target = $region5
  $region4: #{neumf_forward.1} parent=0 // pred_region
    _
  $region5: #{neumf_forward.1} parent=0 // pred_fallthru
    _
  // Predicated region
  $region6: #{neumf_forward.1} parent=0 // pred_check
    _
  $region7: #{neumf_forward.1} parent=0 // pred_check_branch
    %26 = sbr.rel (0) target = $region9
  $region8: #{neumf_forward.1} parent=0 // pred_region
    _
  $region9: #{neumf_forward.1} parent=0 // pred_fallthru
    _
  // Predicated region
  $region10: #{neumf_forward.1} parent=0 // pred_check
    _
  $region11: #{neumf_forward.1} parent=0 // pred_check_branch
    %28 = sbr.rel (0) target = $region13
  $region12: #{neumf_forward.1} parent=0 // pred_region
    _
  $region13: #{neumf_forward.1} parent=0 // pred_fallthru
    _
  // Predicated region
  $region14: #{neumf_forward.1} parent=0 // pred_check
    _
  $region15: #{neumf_forward.1} parent=0 // pred_check_branch
    %30 = sbr.rel (0) target = $region17
  $region16: #{neumf_forward.1} parent=0 // pred_region
    _
  $region17: #{neumf_forward.1} parent=0 // pred_fallthru
    _
  // Predicated region
  $region18: #{neumf_forward.1} parent=0 // pred_check
    _
  $region19: #{neumf_forward.1} parent=0 // pred_check_branch
    %32 = sbr.rel (0) target = $region21
  $region20: #{neumf_forward.1} parent=0 // pred_region
    _
  $region21: #{neumf_forward.1} parent=0 // pred_fallthru
    _
  // Predicated region
  $region22: #{neumf_forward.1} parent=0 // pred_check
    _
  $region23: #{neumf_forward.1} parent=0 // pred_check_branch
    %34 = sbr.rel (0) target = $region25
  $region24: #{neumf_forward.1} parent=0 // pred_region
    _
  $region25: #{neumf_forward.1} parent=0 // pred_fallthru
    _
  // Predicated region
  $region26: #{neumf_forward.1} parent=0 // pred_check
    _
  $region27: #{neumf_forward.1} parent=0 // pred_check_branch
    %36 = sbr.rel (0) target = $region29
  $region28: #{neumf_forward.1} parent=0 // pred_region
    _
  $region29: #{neumf_forward.1} parent=0 // pred_fallthru
    _
  // Predicated region
  $region30: #{neumf_forward.1} parent=0 // pred_check
    _
  $region31: #{neumf_forward.1} parent=0 // pred_check_branch
    %38 = sbr.rel (0) target = $region33
  $region32: #{neumf_forward.1} parent=0 // pred_region
    _
  $region33: #{neumf_forward.1} parent=0 // pred_fallthru
    _
  // Predicated region
  $region34: #{neumf_forward.1} parent=0 // pred_check
    _
  $region35: #{neumf_forward.1} parent=0 // pred_check_branch
    %40 = sbr.rel (0) target = $region37
  $region36: #{neumf_forward.1} parent=0 // pred_region
    _
  $region37: #{neumf_forward.1} parent=0 // pred_fallthru
    _
  // Predicated region
  $region38: #{neumf_forward.1} parent=0 // pred_check
    _
  $region39: #{neumf_forward.1} parent=0 // pred_check_branch
    %42 = sbr.rel (0) target = $region41
  $region40: #{neumf_forward.1} parent=0 // pred_region
    _
  $region41: #{neumf_forward.1} parent=0 // pred_fallthru
    _
  // Predicated region
  $region42: #{neumf_forward.1} parent=0 // pred_check
    _
  $region43: #{neumf_forward.1} parent=0 // pred_check_branch
    %44 = sbr.rel (0) target = $region45
  $region44: #{neumf_forward.1} parent=0 // pred_region
    _
  $region45: #{neumf_forward.1} parent=0 // pred_fallthru
    _
  // Predicated region
  $region46: #{neumf_forward.1} parent=0 // pred_check
    _
  $region47: #{neumf_forward.1} parent=0 // pred_check_branch
    %46 = sbr.rel (0) target = $region49
  $region48: #{neumf_forward.1} parent=0 // pred_region
    _
  $region49: #{neumf_forward.1} parent=0 // pred_fallthru
    _
  // Predicated region
  $region50: #{neumf_forward.1} parent=0 // pred_check
    _
  $region51: #{neumf_forward.1} parent=0 // pred_check_branch
    %48 = sbr.rel (0) target = $region53
  $region52: #{neumf_forward.1} parent=0 // pred_region
    _
  $region53: #{neumf_forward.1} parent=0 // pred_fallthru
    _
  // Predicated region
  $region54: #{neumf_forward.1} parent=0 // pred_check
    _
  $region55: #{neumf_forward.1} parent=0 // pred_check_branch
    %50 = sbr.rel (0) target = $region57
  $region56: #{neumf_forward.1} parent=0 // pred_region
    _
  $region57: #{neumf_forward.1} parent=0 // pred_fallthru
    _
  // Predicated region
  $region58: #{neumf_forward.1} parent=0 // pred_check
    _
  $region59: #{neumf_forward.1} parent=0 // pred_check_branch
    %52 = sbr.rel (0) target = $region61
  $region60: #{neumf_forward.1} parent=0 // pred_region
    _
  $region61: #{neumf_forward.1} parent=0 // pred_fallthru
    _
  // Predicated region
  $region62: #{neumf_forward.1} parent=0 // pred_check
    _
  $region63: #{neumf_forward.1} parent=0 // pred_check_branch
    %54 = sbr.rel (0) target = $region65
  $region64: #{neumf_forward.1} parent=0 // pred_region
    _
  $region65: #{neumf_forward.1} parent=0 // pred_fallthru
    _
  %v56 = vld [vmem:[%s0] sm:$0xf]
  %v57 = vld [vmem:[%s6] sm:$0xf]
  %v58 = vld [vmem:[%s6 + $0x4] sm:$0xf]
  %v59 = vld [vmem:[%s6 + $0x8] sm:$0xf]
  %v60 = vld [vmem:[%s6 + $0xc] sm:$0xf]
  %v61 = vld [vmem:[%s8] sm:$0x1]
  %v63 = vlaneseq
  %v64 = vshrl.u32 %v63, 7
  %v65 = vsub.s32 0, %v64
  %v66 = vrot.slane %v61, %v65
  %v72 = vunpack.c.l.b16 %v57
  %v73 = vunpack.c.l.b16 %v58
  %v74 = vunpack.c.l.b16 %v59
  %v75 = vunpack.c.l.b16 %v60
  %v76 = vpack.c.b16 %v73, %v72
  %v77 = vpack.c.b16 %v75, %v74
  %vm80 = vcmask 261120
  %v82 = vsel %vm80, %v56, 0
  %84 = vmatprep.subr.bf16.mxu0 0
  %85 = vmatpush1.bf16.msra.mxu0 0
  %86 = vmatprep.subr.bf16.mxu0 0
  %87 = vmatpush1.bf16.msra.mxu0 0
  %88 = vmatprep.subr.bf16.mxu0 0
  %89 = vmatpush1.bf16.msra.mxu0 0
  %90 = vmatprep.subr.bf16.mxu0 0
  %91 = vmatpush1.bf16.msra.mxu0 0
  %92 = vmatprep.subr.bf16.mxu0 0
  %93 = vmatpush1.bf16.msra.mxu0 0
  %94 = vmatprep.subr.bf16.mxu0 0
  %95 = vmatpush1.bf16.msra.mxu0 0
  %96 = vmatprep.subr.bf16.mxu0 0
  %97 = vmatpush1.bf16.msra.mxu0 %v77
  %98 = vmatprep.subr.bf16.mxu0 0
  %99 = vmatpush1.bf16.msra.mxu0 %v76
  %100 = vmatprep.subr.bf16.mxu0 0
  %101 = vmatpush2.bf16.msra.mxu0 0
  %102 = vmatprep.subr.bf16.mxu0 0
  %103 = vmatpush2.bf16.msra.mxu0 0
  %104 = vmatprep.subr.bf16.mxu0 0
  %105 = vmatpush2.bf16.msra.mxu0 0
  %106 = vmatprep.subr.bf16.mxu0 0
  %107 = vmatpush2.bf16.msra.mxu0 0
  %108 = vmatprep.subr.bf16.mxu0 0
  %109 = vmatpush2.bf16.msra.mxu0 0
  %110 = vmatprep.subr.bf16.mxu0 0
  %111 = vmatpush2.bf16.msra.mxu0 0
  %112 = vmatprep.subr.bf16.mxu0 0
  %113 = vmatpush2.bf16.msra.mxu0 0
  %114 = vmatprep.subr.bf16.mxu0 0
  %115 = vmatpush2.bf16.msra.mxu0 0
  %116 = vmatprep.mubr.bf16.mxu0 0
  %117 = vmatmul.mubr.bf16.gmra.mxu0 %v82
  %v118 = vpop.f32.mrf.mxu0
  %v119 = vadd.f32 %v66, %v118
  %v120 = vpop.f32.mrf.mxu0
  %v121 = vpop.f32.mrf.mxu0
  %v122 = vpop.f32.mrf.mxu0
  %123 = vdwg.mxu0
  %v124 = vld [vmem:[%s1] sm:$0xf]
  %v125 = vunpack.c.l.bf16 %v124
  %v126 = vld [vmem:[%s13] sm:$0x1]
  %v127 = vld [vmem:[%s14] sm:$0x1]
  %v128 = vld [vmem:[%s2] sm:$0xf]
  %v129 = vld [vmem:[%s7] sm:$0xf]
  %v130 = vld [vmem:[%s7 + $0x4] sm:$0xf]
  %v131 = vld [vmem:[%s7 + $0x8] sm:$0xf]
  %v132 = vld [vmem:[%s7 + $0xc] sm:$0xf]
  %v137 = vunpack.c.l.b16 %v129
  %v138 = vunpack.c.l.b16 %v130
  %v139 = vunpack.c.l.b16 %v131
  %v140 = vunpack.c.l.b16 %v132
  %v141 = vpack.c.b16 %v138, %v137
  %v142 = vpack.c.b16 %v140, %v139
  %v146 = vsel %vm80, %v128, 0
  %148 = vmatprep.subr.bf16.mxu0 0
  %149 = vmatpush1.bf16.msra.mxu0 0
  %150 = vmatprep.subr.bf16.mxu0 0
  %151 = vmatpush1.bf16.msra.mxu0 0
  %152 = vmatprep.subr.bf16.mxu0 0
  %153 = vmatpush1.bf16.msra.mxu0 0
  %154 = vmatprep.subr.bf16.mxu0 0
  %155 = vmatpush1.bf16.msra.mxu0 0
  %156 = vmatprep.subr.bf16.mxu0 0
  %157 = vmatpush1.bf16.msra.mxu0 0
  %158 = vmatprep.subr.bf16.mxu0 0
  %159 = vmatpush1.bf16.msra.mxu0 0
  %160 = vmatprep.subr.bf16.mxu0 0
  %161 = vmatpush1.bf16.msra.mxu0 %v142
  %162 = vmatprep.subr.bf16.mxu0 0
  %163 = vmatpush1.bf16.msra.mxu0 %v141
  %164 = vmatprep.subr.bf16.mxu0 0
  %165 = vmatpush2.bf16.msra.mxu0 0
  %166 = vmatprep.subr.bf16.mxu0 0
  %167 = vmatpush2.bf16.msra.mxu0 0
  %168 = vmatprep.subr.bf16.mxu0 0
  %169 = vmatpush2.bf16.msra.mxu0 0
  %170 = vmatprep.subr.bf16.mxu0 0
  %171 = vmatpush2.bf16.msra.mxu0 0
  %172 = vmatprep.subr.bf16.mxu0 0
  %173 = vmatpush2.bf16.msra.mxu0 0
  %174 = vmatprep.subr.bf16.mxu0 0
  %175 = vmatpush2.bf16.msra.mxu0 0
  %176 = vmatprep.subr.bf16.mxu0 0
  %177 = vmatpush2.bf16.msra.mxu0 0
  %178 = vmatprep.subr.bf16.mxu0 0
  %179 = vmatpush2.bf16.msra.mxu0 0
  %180 = vmatprep.mubr.bf16.mxu0 0
  %181 = vmatmul.mubr.bf16.gmra.mxu0 %v146
  %v182 = vpop.f32.mrf.mxu0
  %v183 = vadd.f32 0.0, %v182
  %v184 = vpop.f32.mrf.mxu0
  %v185 = vpop.f32.mrf.mxu0
  %v186 = vpop.f32.mrf.mxu0
  %187 = vdwg.mxu0
  %v188 = vadd.f32 %v119, %v183
  %v189 = vmax.f32 %v188, 0.0
  %v190 = vpack.c.bf16 %v189, %v189
  %v191 = vld [vmem:[%s9] sm:$0xf]
  %v192 = vld [vmem:[%s9 + $0x4] sm:$0xf]
  %v193 = vld [vmem:[%s9 + $0x8] sm:$0xf]
  %v194 = vld [vmem:[%s9 + $0xc] sm:$0xf]
  %v195 = vld [vmem:[%s10] sm:$0x1]
  %v197 = vlaneseq
  %v198 = vshrl.u32 %v197, 7
  %v199 = vsub.s32 0, %v198
  %v200 = vrot.slane %v195, %v199
  %v206 = vunpack.c.l.b16 %v191
  %v207 = vunpack.c.l.b16 %v192
  %v208 = vunpack.c.l.b16 %v193
  %v209 = vunpack.c.l.b16 %v194
  %v210 = vpack.c.b16 %v207, %v206
  %v211 = vpack.c.b16 %v209, %v208
  %v215 = vsel %vm80, %v190, 0
  %217 = vmatprep.subr.bf16.mxu0 0
  %218 = vmatpush1.bf16.msra.mxu0 0
  %219 = vmatprep.subr.bf16.mxu0 0
  %220 = vmatpush1.bf16.msra.mxu0 0
  %221 = vmatprep.subr.bf16.mxu0 0
  %222 = vmatpush1.bf16.msra.mxu0 0
  %223 = vmatprep.subr.bf16.mxu0 0
  %224 = vmatpush1.bf16.msra.mxu0 0
  %225 = vmatprep.subr.bf16.mxu0 0
  %226 = vmatpush1.bf16.msra.mxu0 0
  %227 = vmatprep.subr.bf16.mxu0 0
  %228 = vmatpush1.bf16.msra.mxu0 0
  %229 = vmatprep.subr.bf16.mxu0 0
  %230 = vmatpush1.bf16.msra.mxu0 %v211
  %231 = vmatprep.subr.bf16.mxu0 0
  %232 = vmatpush1.bf16.msra.mxu0 %v210
  %233 = vmatprep.subr.bf16.mxu0 0
  %234 = vmatpush2.bf16.msra.mxu0 0
  %235 = vmatprep.subr.bf16.mxu0 0
  %236 = vmatpush2.bf16.msra.mxu0 0
  %237 = vmatprep.subr.bf16.mxu0 0
  %238 = vmatpush2.bf16.msra.mxu0 0
  %239 = vmatprep.subr.bf16.mxu0 0
  %240 = vmatpush2.bf16.msra.mxu0 0
  %241 = vmatprep.subr.bf16.mxu0 0
  %242 = vmatpush2.bf16.msra.mxu0 0
  %243 = vmatprep.subr.bf16.mxu0 0
  %244 = vmatpush2.bf16.msra.mxu0 0
  %245 = vmatprep.subr.bf16.mxu0 0
  %246 = vmatpush2.bf16.msra.mxu0 0
  %247 = vmatprep.subr.bf16.mxu0 0
  %248 = vmatpush2.bf16.msra.mxu0 0
  %249 = vmatprep.mubr.bf16.mxu0 0
  %250 = vmatmul.mubr.bf16.gmra.mxu0 %v215
  %v251 = vpop.f32.mrf.mxu0
  %v252 = vadd.f32 %v200, %v251
  %v253 = vpop.f32.mrf.mxu0
  %v254 = vpop.f32.mrf.mxu0
  %v255 = vpop.f32.mrf.mxu0
  %256 = vdwg.mxu0
  %v257 = vmax.f32 %v252, 0.0
  %v258 = vpack.c.bf16 %v257, %v257
  %v259 = vld [vmem:[%s11] sm:$0xf]
  %v260 = vld [vmem:[%s11 + $0x4] sm:$0xf]
  %v261 = vld [vmem:[%s11 + $0x8] sm:$0xf]
  %v262 = vld [vmem:[%s11 + $0xc] sm:$0xf]
  %v263 = vld [vmem:[%s12] sm:$0x1]
  %v265 = vlaneseq
  %v266 = vshrl.u32 %v265, 7
  %v267 = vsub.s32 0, %v266
  %v268 = vrot.slane %v263, %v267
  %v274 = vunpack.c.l.b16 %v259
  %v275 = vunpack.c.l.b16 %v260
  %v276 = vunpack.c.l.b16 %v261
  %v277 = vunpack.c.l.b16 %v262
  %v278 = vpack.c.b16 %v275, %v274
  %v279 = vpack.c.b16 %v277, %v276
  %v283 = vsel %vm80, %v258, 0
  %285 = vmatprep.subr.bf16.mxu0 0
  %286 = vmatpush1.bf16.msra.mxu0 0
  %287 = vmatprep.subr.bf16.mxu0 0
  %288 = vmatpush1.bf16.msra.mxu0 0
  %289 = vmatprep.subr.bf16.mxu0 0
  %290 = vmatpush1.bf16.msra.mxu0 0
  %291 = vmatprep.subr.bf16.mxu0 0
  %292 = vmatpush1.bf16.msra.mxu0 0
  %293 = vmatprep.subr.bf16.mxu0 0
  %294 = vmatpush1.bf16.msra.mxu0 0
  %295 = vmatprep.subr.bf16.mxu0 0
  %296 = vmatpush1.bf16.msra.mxu0 0
  %297 = vmatprep.subr.bf16.mxu0 0
  %298 = vmatpush1.bf16.msra.mxu0 %v279
  %299 = vmatprep.subr.bf16.mxu0 0
  %300 = vmatpush1.bf16.msra.mxu0 %v278
  %301 = vmatprep.subr.bf16.mxu0 0
  %302 = vmatpush2.bf16.msra.mxu0 0
  %303 = vmatprep.subr.bf16.mxu0 0
  %304 = vmatpush2.bf16.msra.mxu0 0
  %305 = vmatprep.subr.bf16.mxu0 0
  %306 = vmatpush2.bf16.msra.mxu0 0
  %307 = vmatprep.subr.bf16.mxu0 0
  %308 = vmatpush2.bf16.msra.mxu0 0
  %309 = vmatprep.subr.bf16.mxu0 0
  %310 = vmatpush2.bf16.msra.mxu0 0
  %311 = vmatprep.subr.bf16.mxu0 0
  %312 = vmatpush2.bf16.msra.mxu0 0
  %313 = vmatprep.subr.bf16.mxu0 0
  %314 = vmatpush2.bf16.msra.mxu0 0
  %315 = vmatprep.subr.bf16.mxu0 0
  %316 = vmatpush2.bf16.msra.mxu0 0
  %317 = vmatprep.mubr.bf16.mxu0 0
  %318 = vmatmul.mubr.bf16.gmra.mxu0 %v283
  %v319 = vpop.f32.mrf.mxu0
  %v320 = vadd.f32 %v268, %v319
  %v321 = vpop.f32.mrf.mxu0
  %v322 = vpop.f32.mrf.mxu0
  %v323 = vpop.f32.mrf.mxu0
  %324 = vdwg.mxu0
  %v325 = vmax.f32 %v320, 0.0
  %v326 = vld [vmem:[%s3] sm:$0xf]
  %v327 = vunpack.c.l.bf16 %v326
  %v328 = vmul.f32 %v125, %v327
  %v330 = vlaneseq
  %v331 = vshrl.u32 %v330, 7
  %v332 = vsub.s32 0, %v331
  %v333 = vrot.slane %v126, %v332
  %v335 = vmul.f32 %v325, %v333
  %v337 = vlaneseq
  %v338 = vshrl.u32 %v337, 7
  %v339 = vsub.s32 0, %v338
  %v340 = vrot.slane %v127, %v339
  %v342 = vmul.f32 %v328, %v340
  %v343 = vadd.f32 %v335, %v342
  %v344 = vsel %vm80, %v343, 0.0
  %345 = vadd.xlane.f32.xlu0 %v344
  %v346 = vpop.xlane.xlu0 %345
  %v347 = vld [vmem:[#allocation2] sm:$0x1]
  %v349 = vlaneseq
  %v350 = vshrl.u32 %v349, 7
  %v351 = vsub.s32 0, %v350
  %v352 = vrot.slane %v347, %v351
  %v354 = vadd.f32 %v346, %v352
  %vm355 = vcmask 7168
  %356 = vst.msk [vmem:[%s16] sm:$0xff] %vm355, %v354
  %v357 = vld [vmem:[%s4] sm:$0xf]
  %v358 = vld [vmem:[%s7] sm:$0xf]
  %v359 = vld [vmem:[%s7 + $0x4] sm:$0xf]
  %v360 = vld [vmem:[%s7 + $0x8] sm:$0xf]
  %v361 = vld [vmem:[%s7 + $0xc] sm:$0xf]
  %v366 = vunpack.c.l.b16 %v358
  %v367 = vunpack.c.l.b16 %v359
  %v368 = vunpack.c.l.b16 %v360
  %v369 = vunpack.c.l.b16 %v361
  %v370 = vpack.c.b16 %v367, %v366
  %v371 = vpack.c.b16 %v369, %v368
  %v375 = vsel %vm80, %v357, 0
  %377 = vmatprep.subr.bf16.mxu0 0
  %378 = vmatpush1.bf16.msra.mxu0 0
  %379 = vmatprep.subr.bf16.mxu0 0
  %380 = vmatpush1.bf16.msra.mxu0 0
  %381 = vmatprep.subr.bf16.mxu0 0
  %382 = vmatpush1.bf16.msra.mxu0 0
  %383 = vmatprep.subr.bf16.mxu0 0
  %384 = vmatpush1.bf16.msra.mxu0 0
  %385 = vmatprep.subr.bf16.mxu0 0
  %386 = vmatpush1.bf16.msra.mxu0 0
  %387 = vmatprep.subr.bf16.mxu0 0
  %388 = vmatpush1.bf16.msra.mxu0 0
  %389 = vmatprep.subr.bf16.mxu0 0
  %390 = vmatpush1.bf16.msra.mxu0 %v371
  %391 = vmatprep.subr.bf16.mxu0 0
  %392 = vmatpush1.bf16.msra.mxu0 %v370
  %393 = vmatprep.subr.bf16.mxu0 0
  %394 = vmatpush2.bf16.msra.mxu0 0
  %395 = vmatprep.subr.bf16.mxu0 0
  %396 = vmatpush2.bf16.msra.mxu0 0
  %397 = vmatprep.subr.bf16.mxu0 0
  %398 = vmatpush2.bf16.msra.mxu0 0
  %399 = vmatprep.subr.bf16.mxu0 0
  %400 = vmatpush2.bf16.msra.mxu0 0
  %401 = vmatprep.subr.bf16.mxu0 0
  %402 = vmatpush2.bf16.msra.mxu0 0
  %403 = vmatprep.subr.bf16.mxu0 0
  %404 = vmatpush2.bf16.msra.mxu0 0
  %405 = vmatprep.subr.bf16.mxu0 0
  %406 = vmatpush2.bf16.msra.mxu0 0
  %407 = vmatprep.subr.bf16.mxu0 0
  %408 = vmatpush2.bf16.msra.mxu0 0
  %409 = vmatprep.mubr.bf16.mxu0 0
  %410 = vmatmul.mubr.bf16.gmra.mxu0 %v375
  %v411 = vpop.f32.mrf.mxu0
  %v412 = vadd.f32 0.0, %v411
  %v413 = vpop.f32.mrf.mxu0
  %v414 = vpop.f32.mrf.mxu0
  %v415 = vpop.f32.mrf.mxu0
  %416 = vdwg.mxu0
  %v417 = vadd.f32 %v119, %v412
  %v418 = vmax.f32 %v417, 0.0
  %v419 = vpack.c.bf16 %v418, %v418
  %v420 = vld [vmem:[%s9] sm:$0xf]
  %v421 = vld [vmem:[%s9 + $0x4] sm:$0xf]
  %v422 = vld [vmem:[%s9 + $0x8] sm:$0xf]
  %v423 = vld [vmem:[%s9 + $0xc] sm:$0xf]
  %v424 = vld [vmem:[%s10] sm:$0x1]
  %v426 = vlaneseq
  %v427 = vshrl.u32 %v426, 7
  %v428 = vsub.s32 0, %v427
  %v429 = vrot.slane %v424, %v428
  %v435 = vunpack.c.l.b16 %v420
  %v436 = vunpack.c.l.b16 %v421
  %v437 = vunpack.c.l.b16 %v422
  %v438 = vunpack.c.l.b16 %v423
  %v439 = vpack.c.b16 %v436, %v435
  %v440 = vpack.c.b16 %v438, %v437
  %v444 = vsel %vm80, %v419, 0
  %446 = vmatprep.subr.bf16.mxu0 0
  %447 = vmatpush1.bf16.msra.mxu0 0
  %448 = vmatprep.subr.bf16.mxu0 0
  %449 = vmatpush1.bf16.msra.mxu0 0
  %450 = vmatprep.subr.bf16.mxu0 0
  %451 = vmatpush1.bf16.msra.mxu0 0
  %452 = vmatprep.subr.bf16.mxu0 0
  %453 = vmatpush1.bf16.msra.mxu0 0
  %454 = vmatprep.subr.bf16.mxu0 0
  %455 = vmatpush1.bf16.msra.mxu0 0
  %456 = vmatprep.subr.bf16.mxu0 0
  %457 = vmatpush1.bf16.msra.mxu0 0
  %458 = vmatprep.subr.bf16.mxu0 0
  %459 = vmatpush1.bf16.msra.mxu0 %v440
  %460 = vmatprep.subr.bf16.mxu0 0
  %461 = vmatpush1.bf16.msra.mxu0 %v439
  %462 = vmatprep.subr.bf16.mxu0 0
  %463 = vmatpush2.bf16.msra.mxu0 0
  %464 = vmatprep.subr.bf16.mxu0 0
  %465 = vmatpush2.bf16.msra.mxu0 0
  %466 = vmatprep.subr.bf16.mxu0 0
  %467 = vmatpush2.bf16.msra.mxu0 0
  %468 = vmatprep.subr.bf16.mxu0 0
  %469 = vmatpush2.bf16.msra.mxu0 0
  %470 = vmatprep.subr.bf16.mxu0 0
  %471 = vmatpush2.bf16.msra.mxu0 0
  %472 = vmatprep.subr.bf16.mxu0 0
  %473 = vmatpush2.bf16.msra.mxu0 0
  %474 = vmatprep.subr.bf16.mxu0 0
  %475 = vmatpush2.bf16.msra.mxu0 0
  %476 = vmatprep.subr.bf16.mxu0 0
  %477 = vmatpush2.bf16.msra.mxu0 0
  %478 = vmatprep.mubr.bf16.mxu0 0
  %479 = vmatmul.mubr.bf16.gmra.mxu0 %v444
  %v480 = vpop.f32.mrf.mxu0
  %v481 = vadd.f32 %v429, %v480
  %v482 = vpop.f32.mrf.mxu0
  %v483 = vpop.f32.mrf.mxu0
  %v484 = vpop.f32.mrf.mxu0
  %485 = vdwg.mxu0
  %v486 = vmax.f32 %v481, 0.0
  %v487 = vpack.c.bf16 %v486, %v486
  %v488 = vld [vmem:[%s11] sm:$0xf]
  %v489 = vld [vmem:[%s11 + $0x4] sm:$0xf]
  %v490 = vld [vmem:[%s11 + $0x8] sm:$0xf]
  %v491 = vld [vmem:[%s11 + $0xc] sm:$0xf]
  %v492 = vld [vmem:[%s12] sm:$0x1]
  %v494 = vlaneseq
  %v495 = vshrl.u32 %v494, 7
  %v496 = vsub.s32 0, %v495
  %v497 = vrot.slane %v492, %v496
  %v503 = vunpack.c.l.b16 %v488
  %v504 = vunpack.c.l.b16 %v489
  %v505 = vunpack.c.l.b16 %v490
  %v506 = vunpack.c.l.b16 %v491
  %v507 = vpack.c.b16 %v504, %v503
  %v508 = vpack.c.b16 %v506, %v505
  %v512 = vsel %vm80, %v487, 0
  %514 = vmatprep.subr.bf16.mxu0 0
  %515 = vmatpush1.bf16.msra.mxu0 0
  %516 = vmatprep.subr.bf16.mxu0 0
  %517 = vmatpush1.bf16.msra.mxu0 0
  %518 = vmatprep.subr.bf16.mxu0 0
  %519 = vmatpush1.bf16.msra.mxu0 0
  %520 = vmatprep.subr.bf16.mxu0 0
  %521 = vmatpush1.bf16.msra.mxu0 0
  %522 = vmatprep.subr.bf16.mxu0 0
  %523 = vmatpush1.bf16.msra.mxu0 0
  %524 = vmatprep.subr.bf16.mxu0 0
  %525 = vmatpush1.bf16.msra.mxu0 0
  %526 = vmatprep.subr.bf16.mxu0 0
  %527 = vmatpush1.bf16.msra.mxu0 %v508
  %528 = vmatprep.subr.bf16.mxu0 0
  %529 = vmatpush1.bf16.msra.mxu0 %v507
  %530 = vmatprep.subr.bf16.mxu0 0
  %531 = vmatpush2.bf16.msra.mxu0 0
  %532 = vmatprep.subr.bf16.mxu0 0
  %533 = vmatpush2.bf16.msra.mxu0 0
  %534 = vmatprep.subr.bf16.mxu0 0
  %535 = vmatpush2.bf16.msra.mxu0 0
  %536 = vmatprep.subr.bf16.mxu0 0
  %537 = vmatpush2.bf16.msra.mxu0 0
  %538 = vmatprep.subr.bf16.mxu0 0
  %539 = vmatpush2.bf16.msra.mxu0 0
  %540 = vmatprep.subr.bf16.mxu0 0
  %541 = vmatpush2.bf16.msra.mxu0 0
  %542 = vmatprep.subr.bf16.mxu0 0
  %543 = vmatpush2.bf16.msra.mxu0 0
  %544 = vmatprep.subr.bf16.mxu0 0
  %545 = vmatpush2.bf16.msra.mxu0 0
  %546 = vmatprep.mubr.bf16.mxu0 0
  %547 = vmatmul.mubr.bf16.gmra.mxu0 %v512
  %v548 = vpop.f32.mrf.mxu0
  %v549 = vadd.f32 %v497, %v548
  %v550 = vpop.f32.mrf.mxu0
  %v551 = vpop.f32.mrf.mxu0
  %v552 = vpop.f32.mrf.mxu0
  %553 = vdwg.mxu0
  %v554 = vmax.f32 %v549, 0.0
  %v555 = vld [vmem:[%s5] sm:$0xf]
  %v556 = vunpack.c.l.bf16 %v555
  %v557 = vmul.f32 %v125, %v556
  %v558 = vmul.f32 %v554, %v333
  %v559 = vmul.f32 %v557, %v340
  %v560 = vadd.f32 %v558, %v559
  %v561 = vsel %vm80, %v560, 0.0
  %562 = vadd.xlane.f32.xlu0 %v561
  %v563 = vpop.xlane.xlu0 %562
  %v564 = vld [vmem:[#allocation2] sm:$0x1]
  %v566 = vlaneseq
  %v567 = vshrl.u32 %v566, 7
  %v568 = vsub.s32 0, %v567
  %v569 = vrot.slane %v564, %v568
  %v571 = vadd.f32 %v563, %v569
  %573 = vrot.lane.b32.xlu0 %v571, 1
  %v574 = vpop.permute.xlu0 %573
  %vm576 = vcmask 15368
  %577 = vst.msk [vmem:[%s16] sm:$0xff] %vm576, %v574
  // Predicated region
  $region66: #{neumf_forward.1} parent=0 // pred_check
    _
  $region67: #{neumf_forward.1} parent=0 // pred_check_branch
    %579 = sbr.rel (0) target = $region69
  $region68: #{neumf_forward.1} parent=0 // pred_region
    _
  $region69: #{neumf_forward.1} parent=0 // pred_fallthru
    _
  // Predicated region
  $region70: #{neumf_forward.1} parent=0 // pred_check
    _
  $region71: #{neumf_forward.1} parent=0 // pred_check_branch
    %581 = sbr.rel (0) target = $region73
  $region72: #{neumf_forward.1} parent=0 // pred_region
    _
  $region73: #{neumf_forward.1} parent=0 // pred_fallthru
    _

</llo_original>
